<compile_context>
chip_gen: v7x
topology: tpu7x:2x2x1
jax: 0.10.0
libtpu: 0.0.40
codegen_flags: <defaults>
</compile_context>

<pallas_src>
import functools

import jax
import jax.numpy as jnp
from jax.experimental import pallas as pl
from jax.experimental.pallas import tpu as pltpu


def _round_up(x, m):
    return ((x + m - 1) // m) * m


def _vmem_capacity_bytes():
    """Physical VMEM of the local TPU; conservative fallback = v7x's 64 MiB."""
    try:
        info = pltpu.get_tpu_info()
        cap = getattr(info, "vmem_capacity_bytes", None)
        if cap:
            return int(cap)
    except Exception:
        pass
    return 64 * 1024 * 1024


def _vmem_needed(tN, tT, tD, in_itemsize, out_itemsize):
    """Estimated VMEM footprint (double-buffered inputs/outputs + scratch).

    The (tN, 2) alignment block and (tN, 2) start/end scratch pad out to 128
    lanes in VMEM, so they are budgeted at tN * 128 words each.
    """
    align_buf = tN * 128 * 4
    feats_buf = tT * tD * in_itemsize
    out_buf = tN * tD * out_itemsize
    acc = tN * tD * 4
    se = tN * 128 * 4
    return 2 * (align_buf + feats_buf + out_buf) + acc + se


def _segmenter_kernel(feat_len_ref, tok_len_ref, align_ref, feats_ref, out_ref,
                      acc_ref, se_ref, *, n_frames):
    # feat_len_ref, tok_len_ref: SMEM scalar-prefetch arrays of shape (B,)
    # align_ref: (tN, 2) float32   -- fractional [start, end] per token
    # feats_ref: (tT, tD)          -- frame tile of encoded features (input dtype)
    # out_ref:   (tN, tD)          -- segmented (averaged) features
    # acc_ref:   (tN, tD) float32  -- accumulator across T tiles
    # se_ref:    (tN, 2)  int32    -- hoisted integer [start, end] per token
    b = pl.program_id(0)
    n = pl.program_id(1)
    t = pl.program_id(3)
    tN = align_ref.shape[0]
    tT = feats_ref.shape[0]

    @pl.when(t == 0)
    def _init():
        acc_ref[...] = jnp.zeros_like(acc_ref)
        # alignments = (frac * feat_len).int()  (trunc toward zero, as torch .int())
        feat_len = feat_len_ref[b].astype(jnp.float32)
        se_ref[...] = (align_ref[...] * feat_len).astype(jnp.int32)

    start = se_ref[:, 0:1]                                    # (tN, 1)
    end = se_ref[:, 1:2]                                       # (tN, 1)

    # Frame-membership mask for this T tile (global frame indices).  `end` is
    # clamped to the last real frame so padded frames can never be selected
    # (zero padding already made them harmless, the clamp makes it explicit).
    frame_idx = t * tT + jax.lax.broadcasted_iota(jnp.int32, (tN, tT), 1)
    mask = (frame_idx >= start) & (frame_idx <= jnp.minimum(end, n_frames - 1))
    # Keep the mask in the feats dtype so bf16 inputs feed the MXU at full rate;
    # accumulation stays f32 via preferred_element_type.
    mask_f = mask.astype(feats_ref.dtype)
    acc_ref[...] += jnp.dot(mask_f, feats_ref[...],
                            preferred_element_type=jnp.float32)

    @pl.when(t == pl.num_programs(3) - 1)
    def _finalize():
        tok_len = tok_len_ref[b]                               # scalar
        row = n * tN + jax.lax.broadcasted_iota(jnp.int32, (tN, 1), 0)
        valid = row < tok_len
        # Analytic count over the real frame range [0, n_frames-1]; clamping
        # end is required when frac == 1.0 maps exactly to n_frames.
        count = jnp.maximum(
            jnp.minimum(end, n_frames - 1) - jnp.maximum(start, 0) + 1, 0)
        count = jnp.where(valid, count, 0).astype(jnp.float32)  # (tN, 1)
        inv = pl.reciprocal(jnp.where(count > 0, count, 1.0), approx=False)
        # nan_to_num(0/0) == 0  ->  select 0 where count == 0
        avg = jnp.where(count > 0, acc_ref[...] * inv, 0.0)
        out_ref[...] = avg.astype(out_ref.dtype)


def local_average_pooling_segmenter(encoded_feats, encoded_feat_lengths,
                                    asr_token_ids, asr_token_lengths,
                                    asr_token_alignments,
                                    *, tile_n=256, tile_t=1024,
                                    max_single_n_tile=512):
    """Pallas equivalent of LocalAveragePoolingSegmenter.forward."""
    B, T, D = encoded_feats.shape
    N = asr_token_ids.shape[1]
    out_dtype = encoded_feats.dtype
    in_itemsize = jnp.dtype(encoded_feats.dtype).itemsize
    out_itemsize = jnp.dtype(out_dtype).itemsize

    D_pad = _round_up(D, 128)                 # lane-dense feats loads / out stores
    N8 = max(_round_up(N, 8), 8)

    # --- token-axis tiling: one tile whenever it fits so feats is read once ---
    if N8 <= max_single_n_tile:
        tN = N8
    else:
        # TODO(synk): for very large N, prefetch per-N-tile first/last T-tile
        # indices and restrict the feats index_map to the intersecting T range
        # (alignments are local/monotone) instead of re-streaming all of T.
        tN = max(8, _round_up(min(tile_n, N8), 8))
    N_pad = _round_up(N, tN)
    n_tiles_n = N_pad // tN

    # --- optional D split so v7x's two TensorCores both get parallel work ---
    d_tiles = 1
    if B * n_tiles_n < 2 and D_pad % 256 == 0:
        d_tiles = 2
    tD = D_pad // d_tiles

    # --- frame-axis tiling: as large as the VMEM budget allows ---
    vmem_cap = _vmem_capacity_bytes()
    budget = min(vmem_cap // 2, 36 * 1024 * 1024)   # leave pipeline headroom
    tT = min(_round_up(T, 8), max(256, _round_up(tile_t, 8)))
    while (_vmem_needed(tN, tT, tD, in_itemsize, out_itemsize) > budget
           and tT > 256):
        tT = max(256, _round_up(tT // 2, 8))
    T_pad = _round_up(T, tT)
    t_tiles = T_pad // tT

    feats = encoded_feats
    if (T_pad, D_pad) != (T, D):
        feats = jnp.pad(feats, ((0, 0), (0, T_pad - T), (0, D_pad - D)))
    align = asr_token_alignments.astype(jnp.float32)
    if N_pad != N:
        align = jnp.pad(align, ((0, 0), (0, N_pad - N), (0, 0)))

    feat_len = encoded_feat_lengths.astype(jnp.int32)
    tok_len = asr_token_lengths.astype(jnp.int32)

    grid = (B, n_tiles_n, d_tiles, t_tiles)
    kernel = functools.partial(_segmenter_kernel, n_frames=T)

    # Truthful traffic estimate: feats is re-read once per N tile.
    cost = pl.CostEstimate(
        flops=2 * B * N_pad * T_pad * D_pad,
        transcendentals=0,
        bytes_accessed=(B * n_tiles_n * T_pad * D_pad * in_itemsize
                        + B * N_pad * D_pad * out_itemsize
                        + B * N_pad * 2 * 4))

    vmem_needed = _vmem_needed(tN, tT, tD, in_itemsize, out_itemsize)
    vmem_limit = int(min(max(2 * vmem_needed, 8 * 1024 * 1024), budget))

    segmented = pl.pallas_call(
        kernel,
        out_shape=jax.ShapeDtypeStruct((B, N_pad, D_pad), out_dtype),
        grid_spec=pltpu.PrefetchScalarGridSpec(
            num_scalar_prefetch=2,          # feat_len, tok_len land in SMEM
            grid=grid,
            in_specs=[
                pl.BlockSpec((None, tN, 2),
                             lambda b, n, d, t, fl, tl: (b, n, 0)),
                pl.BlockSpec((None, tT, tD),
                             lambda b, n, d, t, fl, tl: (b, t, d)),
            ],
            out_specs=pl.BlockSpec((None, tN, tD),
                                   lambda b, n, d, t, fl, tl: (b, n, d)),
            scratch_shapes=[pltpu.VMEM((tN, tD), jnp.float32),
                            pltpu.VMEM((tN, 2), jnp.int32)],
        ),
        compiler_params=pltpu.CompilerParams(
            dimension_semantics=("parallel", "parallel", "parallel",
                                 "arbitrary"),
            vmem_limit_bytes=vmem_limit),
        cost_estimate=cost,
    )(feat_len, tok_len, align, feats)

    segmented = segmented[:, :N, :D]
    return {"segmented_feats": segmented,
            "segmented_feat_lengths": asr_token_lengths}


def _reference(encoded_feats, feat_len, tok_ids, tok_len, align):
    """Plain-JAX transliteration of the PyTorch forward (for verification)."""
    B, T, D = encoded_feats.shape
    N = tok_ids.shape[1]
    alignments = (align * feat_len[:, None, None].astype(jnp.float32)).astype(jnp.int32)
    idx = jnp.arange(T)[None, None, :]                                    # (1,1,T)
    token_mask = (jnp.arange(N)[None, :] < tok_len[:, None])[:, :, None]  # (B,N,1)
    mask = token_mask & (idx >= alignments[:, :, 0:1]) & (idx <= alignments[:, :, 1:2])
    mask_f = mask[..., None].astype(jnp.float32)                          # (B,N,T,1)
    seg = (encoded_feats[:, None] * mask_f).sum(-2) / mask_f.sum(-2)
    return jnp.nan_to_num(seg)


if __name__ == "__main__":
    key = jax.random.PRNGKey(0)
    k_feat, k_align = jax.random.split(key)

    B, T, D, N = 2, 16, 32, 8
    encoded_feats = jax.random.normal(k_feat, (B, T, D), dtype=jnp.float32)
    encoded_feat_lengths = jnp.array([16, 12], dtype=jnp.int32)
    asr_token_ids = jnp.zeros((B, N), dtype=jnp.int32)       # only its shape is used
    asr_token_lengths = jnp.array([8, 5], dtype=jnp.int32)
    # fractional [start, end] alignments in [0, 1], start <= end
    asr_token_alignments = jnp.sort(
        jax.random.uniform(k_align, (B, N, 2), dtype=jnp.float32), axis=-1)

    out = local_average_pooling_segmenter(
        encoded_feats, encoded_feat_lengths, asr_token_ids,
        asr_token_lengths, asr_token_alignments)
    seg = jax.block_until_ready(out["segmented_feats"])

    ref = _reference(encoded_feats, encoded_feat_lengths, asr_token_ids,
                     asr_token_lengths, asr_token_alignments)
    assert seg.shape == (B, N, D)
    assert jnp.allclose(seg, ref, atol=1e-5, rtol=1e-5), "mismatch vs reference"
    assert jnp.array_equal(out["segmented_feat_lengths"], asr_token_lengths)

    print("KERNEL_OK")
</pallas_src>

<mosaic_0001>
module attributes {stable_mosaic.version = 11 : i64} {
  func.func @_segmenter_kernel(%arg0: i32, %arg1: i32, %arg2: i32, %arg3: i32, %arg4: memref<2xi32, #tpu.memory_space<smem>>, %arg5: memref<2xi32, #tpu.memory_space<smem>>, %arg6: memref<1x8x2xf32, #tpu.memory_space<vmem>>, %arg7: memref<1x16x128xf32, #tpu.memory_space<vmem>>, %arg8: memref<1x8x128xf32, #tpu.memory_space<vmem>>, %arg9: memref<8x128xf32, #tpu.memory_space<vmem>>, %arg10: memref<8x2xi32, #tpu.memory_space<vmem>>) attributes {dimension_semantics = [#tpu.dimension_semantics<parallel>, #tpu.dimension_semantics<parallel>, #tpu.dimension_semantics<parallel>, #tpu.dimension_semantics<arbitrary>], iteration_bounds = array<i64: 2, 1, 1, 1>, scalar_prefetch = 2 : i64, scratch_operands = 2 : i64, tpu.core_type = #tpu.core_type<tc>, window_params = [{transform_indices = @transform_0, window_bounds = array<i64: 1, 8, 2>}, {transform_indices = @transform_1, window_bounds = array<i64: 1, 16, 128>}, {transform_indices = @transform_2, window_bounds = array<i64: 1, 8, 128>}]} {
    %c0_i32 = arith.constant 0 : i32
    %0 = arith.cmpi eq, %arg3, %c0_i32 : i32
    %1 = arith.extui %0 : i1 to i32
    %c0_i32_0 = arith.constant 0 : i32
    %2 = arith.cmpi ne, %1, %c0_i32_0 : i32
    scf.if %2 {
      %cst_12 = arith.constant 0.000000e+00 : f32
      %27 = vector.broadcast %cst_12 : f32 to vector<8x128xf32>
      %c0_13 = arith.constant 0 : index
      %c0_14 = arith.constant 0 : index
      %28 = vector.load %arg9[%c0_13, %c0_14] : memref<8x128xf32, #tpu.memory_space<vmem>>, vector<8x128xf32>
      tpu.vector_store %arg9[%c0_13, %c0_14], %27 {strides = array<i32>} : memref<8x128xf32, #tpu.memory_space<vmem>>, vector<8x128xf32>,
      %29 = arith.index_cast %arg0 : i32 to index
      %30 = memref.load %arg4[%29] : memref<2xi32, #tpu.memory_space<smem>>
      %31 = arith.sitofp %30 : i32 to f32
      %c0_15 = arith.constant 0 : index
      %c0_16 = arith.constant 0 : index
      %c0_17 = arith.constant 0 : index
      %32 = vector.load %arg6[%c0_15, %c0_16, %c0_17] : memref<1x8x2xf32, #tpu.memory_space<vmem>>, vector<1x8x2xf32>
      %33 = vector.shape_cast %32 : vector<1x8x2xf32> to vector<8x2xf32>
      %34 = vector.broadcast %31 : f32 to vector<8x2xf32>
      %35 = arith.mulf %33, %34 : vector<8x2xf32>
      %36 = arith.fptosi %35 : vector<8x2xf32> to vector<8x2xi32>
      %c0_18 = arith.constant 0 : index
      %c0_19 = arith.constant 0 : index
      %37 = vector.load %arg10[%c0_18, %c0_19] : memref<8x2xi32, #tpu.memory_space<vmem>>, vector<8x2xi32>
      tpu.vector_store %arg10[%c0_18, %c0_19], %36 {strides = array<i32>} : memref<8x2xi32, #tpu.memory_space<vmem>>, vector<8x2xi32>,
    } else {
    }
    %c0 = arith.constant 0 : index
    %c0_1 = arith.constant 0 : index
    %3 = vector.load %arg10[%c0, %c0_1] : memref<8x2xi32, #tpu.memory_space<vmem>>, vector<8x1xi32>
    %c0_2 = arith.constant 0 : index
    %c1 = arith.constant 1 : index
    %4 = vector.load %arg10[%c0_2, %c1] : memref<8x2xi32, #tpu.memory_space<vmem>>, vector<8x1xi32>
    %c16_i32 = arith.constant 16 : i32
    %5 = arith.muli %arg3, %c16_i32 : i32
    %6 = tpu.iota {dimensions = array<i32: 1>} : vector<8x16xi32>
    %7 = vector.broadcast %5 : i32 to vector<8x16xi32>
    %8 = arith.addi %7, %6 : vector<8x16xi32>
    %9 = vector.broadcast %3 : vector<8x1xi32> to vector<8x16xi32>
    %10 = arith.cmpi sge, %8, %9 : vector<8x16xi32>
    %c15_i32 = arith.constant 15 : i32
    %11 = vector.broadcast %c15_i32 : i32 to vector<8x1xi32>
    %12 = arith.minsi %4, %11 : vector<8x1xi32>
    %13 = vector.broadcast %12 : vector<8x1xi32> to vector<8x16xi32>
    %14 = arith.cmpi sle, %8, %13 : vector<8x16xi32>
    %15 = arith.andi %10, %14 : vector<8x16xi1>
    %16 = arith.extui %15 : vector<8x16xi1> to vector<8x16xi32>
    %17 = arith.sitofp %16 : vector<8x16xi32> to vector<8x16xf32>
    %c0_3 = arith.constant 0 : index
    %c0_4 = arith.constant 0 : index
    %18 = vector.load %arg9[%c0_3, %c0_4] : memref<8x128xf32, #tpu.memory_space<vmem>>, vector<8x128xf32>
    %c0_5 = arith.constant 0 : index
    %c0_6 = arith.constant 0 : index
    %c0_7 = arith.constant 0 : index
    %19 = vector.load %arg7[%c0_5, %c0_6, %c0_7] : memref<1x16x128xf32, #tpu.memory_space<vmem>>, vector<1x16x128xf32>
    %20 = vector.shape_cast %19 : vector<1x16x128xf32> to vector<16x128xf32>
    %cst = arith.constant dense<0.000000e+00> : vector<8x128xf32>
    %21 = tpu.matmul %17, %20, %cst {dimension_numbers = #tpu.dot_dimension_numbers<[1], [0], [0], [1], [0, 0, 1, 1], [], []>} : vector<8x16xf32>, vector<16x128xf32>, vector<8x128xf32> -> vector<8x128xf32>
    %22 = arith.addf %18, %21 : vector<8x128xf32>
    %c0_8 = arith.constant 0 : index
    %c0_9 = arith.constant 0 : index
    %23 = vector.load %arg9[%c0_8, %c0_9] : memref<8x128xf32, #tpu.memory_space<vmem>>, vector<8x128xf32>
    tpu.vector_store %arg9[%c0_8, %c0_9], %22 {strides = array<i32>} : memref<8x128xf32, #tpu.memory_space<vmem>>, vector<8x128xf32>,
    %c0_i32_10 = arith.constant 0 : i32
    %24 = arith.cmpi eq, %arg3, %c0_i32_10 : i32
    %25 = arith.extui %24 : i1 to i32
    %c0_i32_11 = arith.constant 0 : i32
    %26 = arith.cmpi ne, %25, %c0_i32_11 : i32
    scf.if %26 {
      %27 = arith.index_cast %arg0 : i32 to index
      %28 = memref.load %arg5[%27] : memref<2xi32, #tpu.memory_space<smem>>
      %c8_i32 = arith.constant 8 : i32
      %29 = arith.muli %arg1, %c8_i32 : i32
      %30 = tpu.iota {dimensions = array<i32: 0>} : vector<8x1xi32>
      %31 = vector.broadcast %29 : i32 to vector<8x1xi32>
      %32 = arith.addi %31, %30 : vector<8x1xi32>
      %33 = vector.broadcast %28 : i32 to vector<8x1xi32>
      %34 = arith.cmpi slt, %32, %33 : vector<8x1xi32>
      %c15_i32_12 = arith.constant 15 : i32
      %35 = vector.broadcast %c15_i32_12 : i32 to vector<8x1xi32>
      %36 = arith.minsi %4, %35 : vector<8x1xi32>
      %c0_i32_13 = arith.constant 0 : i32
      %37 = vector.broadcast %c0_i32_13 : i32 to vector<8x1xi32>
      %38 = arith.maxsi %3, %37 : vector<8x1xi32>
      %39 = arith.subi %36, %38 : vector<8x1xi32>
      %c1_i32 = arith.constant 1 : i32
      %40 = vector.broadcast %c1_i32 : i32 to vector<8x1xi32>
      %41 = arith.addi %39, %40 : vector<8x1xi32>
      %c0_i32_14 = arith.constant 0 : i32
      %42 = vector.broadcast %c0_i32_14 : i32 to vector<8x1xi32>
      %43 = arith.maxsi %41, %42 : vector<8x1xi32>
      %c0_i32_15 = arith.constant 0 : i32
      %44 = vector.broadcast %c0_i32_15 : i32 to vector<8x1xi32>
      %45 = arith.select %34, %43, %44 : vector<8x1xi1>, vector<8x1xi32>
      %46 = arith.sitofp %45 : vector<8x1xi32> to vector<8x1xf32>
      %cst_16 = arith.constant 0.000000e+00 : f32
      %47 = vector.broadcast %cst_16 : f32 to vector<8x1xf32>
      %48 = arith.cmpf ogt, %46, %47 : vector<8x1xf32>
      %cst_17 = arith.constant 1.000000e+00 : f32
      %49 = vector.broadcast %cst_17 : f32 to vector<8x1xf32>
      %50 = arith.select %48, %46, %49 : vector<8x1xi1>, vector<8x1xf32>
      %51 = tpu.reciprocal %50 : vector<8x1xf32> -> vector<8x1xf32>
      %cst_18 = arith.constant 0.000000e+00 : f32
      %52 = vector.broadcast %cst_18 : f32 to vector<8x1xf32>
      %53 = arith.cmpf ogt, %46, %52 : vector<8x1xf32>
      %c0_19 = arith.constant 0 : index
      %c0_20 = arith.constant 0 : index
      %54 = vector.load %arg9[%c0_19, %c0_20] : memref<8x128xf32, #tpu.memory_space<vmem>>, vector<8x128xf32>
      %55 = vector.broadcast %51 : vector<8x1xf32> to vector<8x128xf32>
      %56 = arith.mulf %54, %55 : vector<8x128xf32>
      %cst_21 = arith.constant 0.000000e+00 : f32
      %57 = vector.shape_cast %53 : vector<8x1xi1> to vector<8x1xi1>
      %58 = vector.broadcast %57 : vector<8x1xi1> to vector<8x128xi1>
      %59 = vector.broadcast %cst_21 : f32 to vector<8x128xf32>
      %60 = arith.select %58, %56, %59 : vector<8x128xi1>, vector<8x128xf32>
      %c0_22 = arith.constant 0 : index
      %c0_23 = arith.constant 0 : index
      %c0_24 = arith.constant 0 : index
      %61 = vector.load %arg8[%c0_22, %c0_23, %c0_24] : memref<1x8x128xf32, #tpu.memory_space<vmem>>, vector<1x8x128xf32>
      %62 = vector.shape_cast %61 : vector<1x8x128xf32> to vector<8x128xf32>
      %63 = vector.shape_cast %60 : vector<8x128xf32> to vector<1x8x128xf32>
      tpu.vector_store %arg8[%c0_22, %c0_23, %c0_24], %63 {strides = array<i32>} : memref<1x8x128xf32, #tpu.memory_space<vmem>>, vector<1x8x128xf32>,
    } else {
    }
    return
  }
  func.func @transform_0(%arg0: i32, %arg1: i32, %arg2: i32, %arg3: i32, %arg4: memref<2xi32, #tpu.memory_space<smem>>, %arg5: memref<2xi32, #tpu.memory_space<smem>>) -> (i32, i32, i32) {
    %c0_i32 = arith.constant 0 : i32
    %c0_i32_0 = arith.constant 0 : i32
    return %arg0, %arg1, %c0_i32 : i32, i32, i32
  }
  func.func @transform_1(%arg0: i32, %arg1: i32, %arg2: i32, %arg3: i32, %arg4: memref<2xi32, #tpu.memory_space<smem>>, %arg5: memref<2xi32, #tpu.memory_space<smem>>) -> (i32, i32, i32) {
    %c0_i32 = arith.constant 0 : i32
    return %arg0, %arg3, %arg2 : i32, i32, i32
  }
  func.func @transform_2(%arg0: i32, %arg1: i32, %arg2: i32, %arg3: i32, %arg4: memref<2xi32, #tpu.memory_space<smem>>, %arg5: memref<2xi32, #tpu.memory_space<smem>>) -> (i32, i32, i32) {
    %c0_i32 = arith.constant 0 : i32
    return %arg0, %arg1, %arg2 : i32, i32, i32
  }
}

</mosaic_0001>

<llo_original>
// kernel: tpu_custom_call.1
$region0: #{tpu_custom_call.1}
  #allocation0 [shape = 'u32[]', space=smem, size = 0x4, offset = 0x4, fixed_abs, tag = 'smem constant byte address 0x4 - core index']
  #allocation1 [shape = 'u32[144,128]{1,0:T(1,128)}', space=vmem, size = 0x12000, scoped, tag = 'internal scratch']
  #allocation2 [shape = 'f32[8,128]{1,0:T(8,128)}', space=vmem, size = 0x1000, scoped, tag = 'scratch operand']
  #allocation3 [shape = 's32[8,2]{1,0:T(8,128)}', space=vmem, size = 0x1000, scoped, tag = 'scratch operand']
  #allocation4 [shape = 's32[1]{0}', space=sflag, size = 0x4, scoped, tag = 'scoped memory for tpu_custom_call.1']
  #allocation5 [shape = 'u8[512]{0}', space=smem, size = 0x200, scoped, tag = 'prefetched SMEM operand 0']
  #allocation6 [shape = 'u8[512]{0}', space=smem, size = 0x200, scoped, tag = 'prefetched SMEM operand 1']
  %s0 = inlined_call_operand.vmem [shape: s32[2], index: 0, kind: input, shape index: {}]
  %s1 = inlined_call_operand.vmem [shape: s32[2], index: 1, kind: input, shape index: {}]
  %s2 = inlined_call_operand.vmem [shape: f32[2,8,2], index: 2, kind: input, shape index: {}]
  %s3 = inlined_call_operand.hbm [shape: f32[2,16,128], index: 3, kind: input, shape index: {}]
  %s4 = inlined_call_operand.hbm [shape: f32[2,8,128], index: 4, kind: output, shape index: {}]
  %s5 = sld [smem:[#allocation0]]
  $region53: #{tpu_custom_call.1} parent=0
    _
  %s7 = ssub.s32 1, %s5
  %s8 = scalar_select 0, %s7, %s5
  %s9 = sshll.u32 %s0, 4
  %s10 = int_to_ptr.vmem [resolvable:$true] %s9
  %12 = dma.vmem_to_smem %s10, 16, [#allocation5], [#allocation4]
  %s13 = sshll.u32 %s1, 4
  %s14 = int_to_ptr.vmem [resolvable:$true] %s13
  %16 = dma.vmem_to_smem %s14, 16, [#allocation6], [#allocation4]
  %17 = dma.done [#allocation4], 32
  %18 = sfence
  $region1: #{tpu_custom_call.1} parent=0
    #allocation7 [shape = 'u8[16384]{0}', space=vmem, size = 0x4000, scoped, tag = 'input window, operand 3']
    #allocation8 [shape = 's32[2]{0}', space=sflag, size = 0x8, scoped, tag = 'scoped memory for tpu_custom_call.1']
    #allocation9 [shape = 's32[2]{0}', space=sflag, size = 0x8, scoped, tag = 'scoped memory for tpu_custom_call.1']
    #allocation10 [shape = 'u8[8192]{0}', space=vmem, size = 0x2000, scoped, tag = 'output window, operand 0']
    %19 = vsyncpa [#allocation8], 0
    %s20 = scalar_lea.sflag [#allocation8], 1
    %21 = vsyncpa %s20, 0
    %22 = vsyncpa [#allocation9], 0
    %s23 = scalar_lea.sflag [#allocation9], 1
    %24 = vsyncpa %s23, 0
    loop: start=0, step=1, limit=4
    $region2: #{tpu_custom_call.1} parent=1 // loop_pre_header
      _
    $region3: #{tpu_custom_call.1} parent=1 // loop_header
      %s26 = sphi 0, %s30
      %p27 = scmp.ge.s32.totalorder %s26, 4
      %s33 = sphi 0, %s59
      %s34 = sphi 0, %s55
      %s35 = sphi 0, %s51
      %s36 = sphi 0, %s47
      %s37 = sphi 0, %s33
      %s38 = sphi 0, %s34
      %s39 = sphi 0, %s35
      %s40 = sphi 0, %s36
      %s41 = sphi 0, %s37
      %s42 = sphi 0, %s38
      %s43 = sphi 0, %s39
      %s44 = sphi 0, %s40
      %s64 = sphi 0, %s66
      %s67 = sphi 0, %s64
      %s68 = sphi 0, %s67
      %s84 = sphi 0, %s68
      %s94 = sphi 0, %s96
      %s97 = sphi 0, %s94
      %s98 = sphi 0, %s97
      %s114 = sphi 0, %s98
      %s124 = sphi 0, %s126
      %s127 = sphi 0, %s124
      %s128 = sphi 0, %s127
      %s144 = sphi 0, %s128
    $region4: #{tpu_custom_call.1} parent=1 // loop_header_branch
      %29 = sbr.rel (%p27) target = $region8
    $region5: #{tpu_custom_call.1} parent=1 // loop_body
      %s31 = ssub.s32 %s26, 1
      %s32 = ssub.s32 %s26, 2
      %s45 = sadd.s32 1, %s36
      %p46 = scmp.ge.s32.totalorder %s45, 1
      %s47 = scalar_select %p46, 0, %s45
      %s48 = sadd.s32 1, %s35
      %s49 = scalar_select %p46, %s48, %s35
      %p50 = scmp.ge.s32.totalorder %s49, 1
      %s51 = scalar_select %p50, 0, %s49
      %s52 = sadd.s32 1, %s34
      %s53 = scalar_select %p50, %s52, %s34
      %p54 = scmp.ge.s32.totalorder %s53, 1
      %s55 = scalar_select %p54, 0, %s53
      %s56 = sadd.s32 1, %s33
      %s57 = scalar_select %p54, %s56, %s33
      %p58 = scmp.ge.s32.totalorder %s57, 2
      %s59 = scalar_select %p58, 0, %s57
      %s60 = ssub.s32 %s33, %s59
      %s61 = ssub.s32 %s34, %s55
      %s62 = sor.u32 %s60, %s61
      %p63 = scmp.eq.s32.totalorder %s62, 0
      %s65 = sadd.s32 %s64, 1
      %s66 = scalar_select %p63, %s64, %s65
      %p69 = pneg %p63
      %p70 = scmp.eq.s32.totalorder %s26, 1
      %p71 = por %p69, %p70
      %p72 = scmp.ne.s32.totalorder %s64, %s67
      %p73 = scmp.eq.s32.totalorder %s26, 0
      %p74 = por %p72, %p73
      %p75 = scmp.ne.s32.totalorder %s64, %s67
      %p76 = scmp.eq.s32.totalorder %s31, 1
      %p77 = por %p75, %p76
      %p78 = scmp.ne.s32.totalorder %s67, %s68
      %p79 = scmp.eq.s32.totalorder %s31, 0
      %p80 = por %p78, %p79
      %p81 = scmp.ne.s32.totalorder %s67, %s68
      %p82 = scmp.eq.s32.totalorder %s32, 1
      %p83 = por %p81, %p82
      %p85 = scmp.ne.s32.totalorder %s68, %s84
      %p86 = scmp.eq.s32.totalorder %s32, 0
      %p87 = por %p85, %p86
      %s88 = ssub.s32 %s33, %s59
      %s89 = ssub.s32 %s36, %s47
      %s90 = sor.u32 %s88, %s89
      %s91 = ssub.s32 %s35, %s51
      %s92 = sor.u32 %s90, %s91
      %p93 = scmp.eq.s32.totalorder %s92, 0
      %s95 = sadd.s32 %s94, 1
      %s96 = scalar_select %p93, %s94, %s95
      %p99 = pneg %p93
      %p100 = scmp.eq.s32.totalorder %s26, 1
      %p101 = por %p99, %p100
      %p102 = scmp.ne.s32.totalorder %s94, %s97
      %p103 = scmp.eq.s32.totalorder %s26, 0
      %p104 = por %p102, %p103
      %p105 = scmp.ne.s32.totalorder %s94, %s97
      %p106 = scmp.eq.s32.totalorder %s31, 1
      %p107 = por %p105, %p106
      %p108 = scmp.ne.s32.totalorder %s97, %s98
      %p109 = scmp.eq.s32.totalorder %s31, 0
      %p110 = por %p108, %p109
      %p111 = scmp.ne.s32.totalorder %s97, %s98
      %p112 = scmp.eq.s32.totalorder %s32, 1
      %p113 = por %p111, %p112
      %p115 = scmp.ne.s32.totalorder %s98, %s114
      %p116 = scmp.eq.s32.totalorder %s32, 0
      %p117 = por %p115, %p116
      %s118 = ssub.s32 %s33, %s59
      %s119 = ssub.s32 %s34, %s55
      %s120 = sor.u32 %s118, %s119
      %s121 = ssub.s32 %s35, %s51
      %s122 = sor.u32 %s120, %s121
      %p123 = scmp.eq.s32.totalorder %s122, 0
      %s125 = sadd.s32 %s124, 1
      %s126 = scalar_select %p123, %s124, %s125
      %p129 = pneg %p123
      %p130 = scmp.eq.s32.totalorder %s26, 1
      %p131 = por %p129, %p130
      %p132 = scmp.ne.s32.totalorder %s124, %s127
      %p133 = scmp.eq.s32.totalorder %s26, 0
      %p134 = por %p132, %p133
      %p135 = scmp.ne.s32.totalorder %s124, %s127
      %p136 = scmp.eq.s32.totalorder %s31, 1
      %p137 = por %p135, %p136
      %p138 = scmp.ne.s32.totalorder %s127, %s128
      %p139 = scmp.eq.s32.totalorder %s31, 0
      %p140 = por %p138, %p139
      %p141 = scmp.ne.s32.totalorder %s127, %s128
      %p142 = scmp.eq.s32.totalorder %s32, 1
      %p143 = por %p141, %p142
      %p145 = scmp.ne.s32.totalorder %s128, %s144
      %p146 = scmp.eq.s32.totalorder %s32, 0
      %p147 = por %p145, %p146
      %p148 = scmp.le.s32.totalorder 1, %s26
      %p149 = scmp.lt.s32.totalorder %s26, 3
      %p150 = pnand %p148, %p149
      %p151 = pneg %p150
      // Predicated region
      $region9: #{tpu_custom_call.1} parent=5 // pred_check
        _
      $region10: #{tpu_custom_call.1} parent=5 // pred_check_branch
        %153 = sbr.rel (%p150) target = $region12
      $region11: #{tpu_custom_call.1} parent=5 // pred_region
        %s154 = ssub.s32 %s26, 1
      $region12: #{tpu_custom_call.1} parent=5 // pred_fallthru
        _
      %p155 = scmp.lt.s32.totalorder %s26, 2
      // Predicated region
      $region13: #{tpu_custom_call.1} parent=5 // pred_check
        %p156 = pneg %p155
      $region14: #{tpu_custom_call.1} parent=5 // pred_check_branch
        %158 = sbr.rel (%p156) target = $region16
      $region15: #{tpu_custom_call.1} parent=5 // pred_region
        // Predicated region
        $region17: #{tpu_custom_call.1} parent=15 // pred_check
          %p159 = pneg %p74
        $region18: #{tpu_custom_call.1} parent=15 // pred_check_branch
          %161 = sbr.rel (%p159) target = $region20
        $region19: #{tpu_custom_call.1} parent=15 // pred_region
          %p162 = scmp.lt.s32.totalorder %s33, 1
          %s163 = scalar_select %p162, %s33, 1
          %p164 = scmp.lt.s32.totalorder %s34, 0
          %s165 = scalar_select %p164, %s34, 0
          %s166 = sadd.s32 %s165, %s163
          %s167 = smul.addr %s166, 8
          %s168 = scalar_lea.vmem %s2, %s167
        $region20: #{tpu_custom_call.1} parent=15 // pred_fallthru
          _
        // Predicated region
        $region21: #{tpu_custom_call.1} parent=15 // pred_check
          %p169 = pneg %p104
        $region22: #{tpu_custom_call.1} parent=15 // pred_check_branch
          %171 = sbr.rel (%p169) target = $region24
        $region23: #{tpu_custom_call.1} parent=15 // pred_region
          %s172 = sand.u32 %s94, 1
          %s173 = scalar_lea.sflag [#allocation8], %s172
          %s174 = sand.u32 %s94, 1
          %s175 = smul.addr %s174, 16
          %s176 = scalar_lea.vmem [#allocation7], %s175
          %s177 = smul.u32 2, %s36
          %s179 = ssub.s32 256, 256
          %180 = vsyncadd %s173, %s179
          %s181 = sadd.s32 %s35, %s177
          %s182 = smul.addr %s33, 2
          %s183 = sadd.s32 %s181, %s182
          %s184 = smul.addr %s183, 128
          %s185 = scalar_lea.hbm %s3, %s184
          %s186 = sshll.u32 %s176, 4
          %s187 = int_to_ptr.vmem [resolvable:$true] %s186
          %192 = dma.hbm_to_vmem [thread:$0]  %s185, 256, %s187, %s173, 128, 128, 8
        $region24: #{tpu_custom_call.1} parent=15 // pred_fallthru
          _
      $region16: #{tpu_custom_call.1} parent=5 // pred_fallthru
        _
      %p193 = scmp.le.s32.totalorder 1, %s26
      %p194 = scmp.lt.s32.totalorder %s26, 3
      %p195 = pnand %p193, %p194
      %p196 = pneg %p195
      // Predicated region
      $region25: #{tpu_custom_call.1} parent=5 // pred_check
        _
      $region26: #{tpu_custom_call.1} parent=5 // pred_check_branch
        %198 = sbr.rel (%p195) target = $region28
      $region27: #{tpu_custom_call.1} parent=5 // pred_region
        %s199 = ssub.s32 %s26, 1
        %s200 = sand.u32 %s97, 1
        %s201 = scalar_lea.sflag [#allocation8], %s200
        %s202 = sand.u32 %s97, 1
        %s203 = smul.addr %s202, 16
        %s204 = scalar_lea.vmem [#allocation7], %s203
        // Predicated region
        $region29: #{tpu_custom_call.1} parent=27 // pred_check
          %p205 = pneg %p110
        $region30: #{tpu_custom_call.1} parent=27 // pred_check_branch
          %207 = sbr.rel (%p205) target = $region32
        $region31: #{tpu_custom_call.1} parent=27 // pred_region
          %208 = dma.done %s201, 256
        $region32: #{tpu_custom_call.1} parent=27 // pred_fallthru
          _
        %p209 = scmp.lt.s32.totalorder %s37, 1
        %s210 = scalar_select %p209, %s37, 1
        %p211 = scmp.lt.s32.totalorder %s38, 0
        %s212 = scalar_select %p211, %s38, 0
        %s213 = sadd.s32 %s212, %s210
        %s214 = smul.addr %s213, 8
        %s215 = scalar_lea.vmem %s2, %s214
        %p216 = pneg %p80
        %p217 = pneg %p77
        %s218 = sand.u32 %s97, 1
        %s219 = scalar_lea.sflag [#allocation8], %s218
        %s220 = sand.u32 %s97, 1
        %s221 = smul.addr %s220, 16
        %s222 = scalar_lea.vmem [#allocation7], %s221
        %p223 = pneg %p110
        %p224 = pneg %p107
        %p225 = pneg %p140
        %p226 = pneg %p137
        %s227 = sand.u32 %s127, 1
        %s228 = scalar_lea.sflag [#allocation9], %s227
        %s229 = sand.u32 %s127, 1
        %s230 = smul.addr %s229, 8
        %s231 = scalar_lea.vmem [#allocation10], %s230
        %p232 = scmp.lt.s32.totalorder %s37, 1
        %s233 = scalar_select %p232, %s37, 1
        %p234 = scmp.lt.s32.totalorder %s38, 0
        %s235 = scalar_select %p234, %s38, 0
        %s236 = sadd.s32 %s235, %s233
        %s237 = smul.addr %s236, 8
        %s238 = scalar_lea.vmem %s2, %s237
        %s239 = smul.u32 2, %s40
        %p240 = scmp.eq.s32.totalorder %s40, 0
        // Predicated region
        $region33: #{tpu_custom_call.1} parent=27 // pred_check
          %p241 = pneg %p240
        $region34: #{tpu_custom_call.1} parent=27 // pred_check_branch
          %243 = sbr.rel (%p241) target = $region36
        $region35: #{tpu_custom_call.1} parent=27 // pred_region
          %244 = vst [vmem:[#allocation2] sm:$0xff] 0.0
          %s245 = sld [smem:[#allocation5 + %s37]]
          %s246 = scvt.s32.f32 %s245
          %v247 = vld [vmem:[%s238] sm:$0xff]
          %v248 = vstv %s246
          %v249 = vmul.f32 %v247, %v248
          %v250 = vcvt.f32.s32.to.zero.pseudo %v249
          %vm251 = vcmask 15360
          %252 = vst.msk [vmem:[#allocation3] sm:$0xff] %vm251, %v250
        $region36: #{tpu_custom_call.1} parent=27 // pred_fallthru
          _
        %v253 = vld [vmem:[#allocation3] sm:$0xff]
        %s254 = smul.u32 %s40, 16
        %v255 = vlaneseq
        %v256 = vand.u32 %v255, 127
        %v257 = vstv %s254
        %v258 = vadd.s32 %v257, %v256
        %259 = vset.pattern.permute.xlu0 0
        %260 = vperm.xlu0 %259, %v253
        %v261 = vpop.permute.xlu0 %260
        %vm262 = vcmp.ge.s32.totalorder %v258, %v261
        %vm263 = vcmp.lt.s32.totalorder %v253, 15
        %v264 = vsel %vm263, %v253, 15
        %265 = vset.pattern.permute.xlu0 1
        %266 = vperm.xlu0 %265, %v264
        %v267 = vpop.permute.xlu0 %266
        %vm268 = vcmp.le.s32.totalorder %v258, %v267
        %vm269 = vmand %vm262, %vm268
        %v270 = vsel %vm269, 1, 0
        %v271 = vcvt.s32.f32 %v270
        %v272 = vld [vmem:[#allocation2] sm:$0xff]
        %v273 = vld [vmem:[%s204] sm:$0xff]
        %v274 = vld [vmem:[%s204 + $0x8] sm:$0xff]
        %vm275 = vcmask 130048
        %v277 = vsel %vm275, %v271, 0
        %279 = vmatprep.subr.mxu0 0.0
        %280 = vmatpush1.msra.mxu0 %v273
        %281 = vmatprep.subr.mxu0 0.0
        %282 = vmatpush1.msra.mxu0 %v274
        %283 = vmatprep.subr.mxu0 0.0
        %284 = vmatpush1.msra.mxu0 0.0
        %285 = vmatprep.subr.mxu0 0.0
        %286 = vmatpush1.msra.mxu0 0.0
        %287 = vmatprep.subr.mxu0 0.0
        %288 = vmatpush1.msra.mxu0 0.0
        %289 = vmatprep.subr.mxu0 0.0
        %290 = vmatpush1.msra.mxu0 0.0
        %291 = vmatprep.subr.mxu0 0.0
        %292 = vmatpush1.msra.mxu0 0.0
        %293 = vmatprep.subr.mxu0 0.0
        %294 = vmatpush1.msra.mxu0 0.0
        %295 = vmatprep.subr.mxu0 0.0
        %296 = vmatpush1.msra.mxu0 0.0
        %297 = vmatprep.subr.mxu0 0.0
        %298 = vmatpush1.msra.mxu0 0.0
        %299 = vmatprep.subr.mxu0 0.0
        %300 = vmatpush1.msra.mxu0 0.0
        %301 = vmatprep.subr.mxu0 0.0
        %302 = vmatpush1.msra.mxu0 0.0
        %303 = vmatprep.subr.mxu0 0.0
        %304 = vmatpush1.msra.mxu0 0.0
        %305 = vmatprep.subr.mxu0 0.0
        %306 = vmatpush1.msra.mxu0 0.0
        %307 = vmatprep.subr.mxu0 0.0
        %308 = vmatpush1.msra.mxu0 0.0
        %309 = vmatprep.subr.mxu0 0.0
        %310 = vmatpush1.msra.mxu0 0.0
        %311 = vmatprep.subr.mxu0 0.0
        %312 = vmatpush1.msra.mxu0 0.0
        %313 = vmatprep.subr.mxu0 0.0
        %314 = vmatpush1.msra.mxu0 0.0
        %315 = vmatprep.subr.mxu0 0.0
        %316 = vmatpush1.msra.mxu0 0.0
        %317 = vmatprep.subr.mxu0 0.0
        %318 = vmatpush1.msra.mxu0 0.0
        %319 = vmatprep.subr.mxu0 0.0
        %320 = vmatpush1.msra.mxu0 0.0
        %321 = vmatprep.subr.mxu0 0.0
        %322 = vmatpush1.msra.mxu0 0.0
        %323 = vmatprep.subr.mxu0 0.0
        %324 = vmatpush1.msra.mxu0 0.0
        %325 = vmatprep.subr.mxu0 0.0
        %326 = vmatpush1.msra.mxu0 0.0
        %327 = vmatprep.subr.mxu0 0.0
        %328 = vmatpush1.msra.mxu0 0.0
        %329 = vmatprep.subr.mxu0 0.0
        %330 = vmatpush1.msra.mxu0 0.0
        %331 = vmatprep.subr.mxu0 0.0
        %332 = vmatpush1.msra.mxu0 0.0
        %333 = vmatprep.subr.mxu0 0.0
        %334 = vmatpush1.msra.mxu0 0.0
        %335 = vmatprep.subr.mxu0 0.0
        %336 = vmatpush1.msra.mxu0 0.0
        %337 = vmatprep.subr.mxu0 0.0
        %338 = vmatpush1.msra.mxu0 0.0
        %339 = vmatprep.subr.mxu0 0.0
        %340 = vmatpush1.msra.mxu0 0.0
        %341 = vmatprep.subr.mxu0 0.0
        %342 = vmatpush1.msra.mxu0 0.0
        %343 = vmatprep.mubr.f32.mxu0 0.0
        %344 = vmatmul.mubr.f32.gmra.mrb[0].mxu0 %v277
        %v345 = vpop.f32.mrb[0].mxu0
        %v346 = vadd.f32 0.0, %v345
        %v347 = vpop.f32.mrb[0].mxu0
        %348 = vdwg.mxu0
        %v349 = vadd.f32 %v272, %v346
        %350 = vst [vmem:[#allocation2] sm:$0xff] %v349
        // Predicated region
        $region37: #{tpu_custom_call.1} parent=27 // pred_check
          %p351 = pneg %p240
        $region38: #{tpu_custom_call.1} parent=27 // pred_check_branch
          %353 = sbr.rel (%p351) target = $region40
        $region39: #{tpu_custom_call.1} parent=27 // pred_region
          %s354 = sld [smem:[#allocation6 + %s37]]
          %s355 = smul.u32 %s38, 8
          %v356 = vlaneseq
          %v357 = vshrl.u32 %v356, 7
          %v358 = vstv %s355
          %v359 = vadd.s32 %v358, %v357
          %v360 = vstv %s354
          %vm361 = vcmp.lt.s32.totalorder %v359, %v360
          %vm362 = vcmp.gt.s32.totalorder %v253, 0
          %v363 = vsel %vm362, %v253, 0
          %364 = vrot.lane.b32.xlu0 %v363, 1
          %v365 = vpop.permute.xlu0 %364
          %v366 = vsub.s32 %v264, %v365
          %v367 = vadd.s32 %v366, 1
          %vm368 = vcmp.gt.s32.totalorder %v367, 0
          %v369 = vsel %vm368, %v367, 0
          %v370 = vsel %vm361, %v369, 0
          %v371 = vcvt.s32.f32 %v370
          %vm372 = vcmp.gt.f32.partialorder %v371, 0.0
          %v373 = vsel %vm372, %v371, 1.0
          %v374 = vrcp.pop %v373
          %v375 = vld [vmem:[#allocation2] sm:$0xff]
          %377 = vset.pattern.permute.xlu0 1
          %378 = vperm.xlu0 %377, %v374
          %v379 = vpop.permute.xlu0 %378
          %v381 = vmul.f32 %v375, %v379
          %v382 = vsel %vm372, 1, 0
          %383 = vset.pattern.permute.xlu0 1
          %384 = vperm.xlu0 %383, %v382
          %v385 = vpop.permute.xlu0 %384
          %vm386 = vcmp.eq.s32.totalorder %v385, 1
          %v387 = vsel %vm386, %v381, 0.0
          %388 = vst [vmem:[%s231] sm:$0xff] %v387
        $region40: #{tpu_custom_call.1} parent=27 // pred_fallthru
          _
        %s389 = sand.u32 %s127, 1
        %s390 = scalar_lea.sflag [#allocation9], %s389
        %s391 = sand.u32 %s127, 1
        %s392 = smul.addr %s391, 8
        %s393 = scalar_lea.vmem [#allocation10], %s392
        // Predicated region
        $region41: #{tpu_custom_call.1} parent=27 // pred_check
          %p394 = pneg %p137
        $region42: #{tpu_custom_call.1} parent=27 // pred_check_branch
          %396 = sbr.rel (%p394) target = $region44
        $region43: #{tpu_custom_call.1} parent=27 // pred_region
          %s398 = ssub.s32 128, 128
          %399 = vsyncadd %s390, %s398
          %s400 = sadd.s32 %s39, %s38
          %s401 = sadd.s32 %s400, %s37
          %s402 = smul.addr %s401, 128
          %s403 = scalar_lea.hbm %s4, %s402
          %s405 = sshll.u32 %s393, 4
          %s406 = int_to_ptr.vmem [resolvable:$true] %s405
          %408 = dma.vmem_to_hbm [thread:$0]  %s406, 128, %s403, %s390
        $region44: #{tpu_custom_call.1} parent=27 // pred_fallthru
          _
      $region28: #{tpu_custom_call.1} parent=5 // pred_fallthru
        _
      %p409 = scmp.le.s32.totalorder 2, %s26
      // Predicated region
      $region45: #{tpu_custom_call.1} parent=5 // pred_check
        %p410 = pneg %p409
      $region46: #{tpu_custom_call.1} parent=5 // pred_check_branch
        %412 = sbr.rel (%p410) target = $region48
      $region47: #{tpu_custom_call.1} parent=5 // pred_region
        %s413 = ssub.s32 %s26, 2
        // Predicated region
        $region49: #{tpu_custom_call.1} parent=47 // pred_check
          %p414 = pneg %p143
        $region50: #{tpu_custom_call.1} parent=47 // pred_check_branch
          %416 = sbr.rel (%p414) target = $region52
        $region51: #{tpu_custom_call.1} parent=47 // pred_region
          %s417 = sand.u32 %s128, 1
          %s418 = scalar_lea.sflag [#allocation9], %s417
          %s419 = sand.u32 %s128, 1
          %s420 = smul.addr %s419, 8
          %s421 = scalar_lea.vmem [#allocation10], %s420
          %422 = dma.done %s418, 128
        $region52: #{tpu_custom_call.1} parent=47 // pred_fallthru
          _
      $region48: #{tpu_custom_call.1} parent=5 // pred_fallthru
        _
    $region6: #{tpu_custom_call.1} parent=1 // loop_footer
      %s30 = sadd.s32 1, %s26
    $region7: #{tpu_custom_call.1} parent=1 // loop_footer_branch
      %25 = sbr.rel target = $region3
    $region8: #{tpu_custom_call.1} parent=1 // loop_exit
      _
    %423 = vsyncpa [#allocation8], 1
    %s424 = scalar_lea.sflag [#allocation8], 1
    %425 = vsyncpa %s424, 1
    %426 = vsyncpa [#allocation9], 1
    %s427 = scalar_lea.sflag [#allocation9], 1
    %428 = vsyncpa %s427, 1

</llo_original>
